<compile_context>
chip_gen: v5e
topology: v5e:2x2
jax: 0.10.0
libtpu: 0.0.40
codegen_flags: <defaults>
</compile_context>

<pallas_src>
import jax
import jax.numpy as jnp
from jax.experimental import pallas as pl
from jax.experimental.pallas import tpu as pltpu

EPS = 1e-5


def _layernorm_kernel(x_ref, g_ref, b_ref, o_ref):
    # x_ref/o_ref: (C, TH, TW) -- batch dim squeezed; g_ref/b_ref: (C, 1, 1).
    x = x_ref[...].astype(jnp.float32)                  # (C, TH, TW)
    mean = jnp.mean(x, axis=0, keepdims=True)            # (1, TH, TW): reduce over leading C
    xc = x - mean
    var = jnp.mean(xc * xc, axis=0, keepdims=True)       # (1, TH, TW)
    inv = jax.lax.rsqrt(var + EPS)
    y = xc * inv
    y = y * g_ref[...].astype(jnp.float32) + b_ref[...].astype(jnp.float32)
    o_ref[...] = y.astype(o_ref.dtype)


def _cdiv(a, b):
    return (a + b - 1) // b


def _plan(B, C, H, W, itemsize):
    """Pick (TH, TW, vmem_limit_bytes) per TPU generation.

    Footprint model: 2 x input block + 2 x output block (double-buffered) plus
    one f32 working copy  ==> ~6 x block_bytes must fit the VMEM budget.
    """
    cap = 64 * 1024 * 1024  # conservative fallback (v7x per-TC VMEM)
    try:
        cap = int(getattr(pltpu.get_tpu_info(), "vmem_capacity_bytes", cap))
    except Exception:
        pass
    # ~48 MiB budget on v7x (64 MiB physical), ~96 MiB on v5e/v6e (128 MiB).
    budget = min(cap * 3 // 4, 96 * 1024 * 1024)
    max_block = max(budget // 6, C * 8 * 128 * itemsize)

    # Lane axis: keep full-W rows (legal even when W % 128 != 0).  Only split W
    # when it is a clean multiple of 128 and a single 8-row slab already blows
    # the block budget (keeps stores lane-dense).
    tw = W
    if W % 128 == 0:
        while tw % 256 == 0 and C * 8 * tw * itemsize > max_block:
            tw //= 2

    # Sublane axis: biggest multiple of 8 (or full H) that fits the budget.
    row_bytes = C * tw * itemsize
    if H % 8 == 0:
        th = (max_block // row_bytes) // 8 * 8
        th = int(min(max(th, 8), H))
        # v7x megacore: keep >= 2 grid steps so both TensorCores get work.
        if B * _cdiv(H, th) * _cdiv(W, tw) < 2 and H >= 16:
            th = max(8, (H // 2) // 8 * 8)
    else:
        th = H  # full-dim block is the only legal non-multiple-of-8 choice

    block_bytes = C * th * tw * itemsize
    vmem_limit = int(min(cap * 7 // 8, max(budget, 6 * block_bytes + (2 << 20))))
    return th, tw, vmem_limit


def layer_norm_nchw(x, gamma, beta):
    """x: (B, C, H, W); gamma, beta: (C,). Returns (B, C, H, W)."""
    B, C, H, W = x.shape
    th, tw, vmem_limit = _plan(B, C, H, W, x.dtype.itemsize)

    g = gamma.reshape(C, 1, 1)
    b = beta.reshape(C, 1, 1)

    return pl.pallas_call(
        _layernorm_kernel,
        out_shape=jax.ShapeDtypeStruct((B, C, H, W), x.dtype),
        grid_spec=pltpu.PrefetchScalarGridSpec(
            num_scalar_prefetch=0,
            grid=(B, pl.cdiv(H, th), pl.cdiv(W, tw)),
            in_specs=[
                pl.BlockSpec((None, C, th, tw), lambda bb, i, j: (bb, 0, i, j)),
                pl.BlockSpec((C, 1, 1), lambda bb, i, j: (0, 0, 0)),
                pl.BlockSpec((C, 1, 1), lambda bb, i, j: (0, 0, 0)),
            ],
            out_specs=pl.BlockSpec((None, C, th, tw), lambda bb, i, j: (bb, 0, i, j)),
        ),
        compiler_params=pltpu.CompilerParams(
            dimension_semantics=("parallel", "parallel", "parallel"),
            vmem_limit_bytes=vmem_limit,
        ),
    )(x, g, b)


if __name__ == "__main__":
    key = jax.random.PRNGKey(0)
    kx, kg, kb = jax.random.split(key, 3)

    B, C, H, W = 2, 4, 16, 16
    x = jax.random.normal(kx, (B, C, H, W), dtype=jnp.float32)
    # deterministic, non-trivial params (PyTorch default would be ones / zeros)
    gamma = 1.0 + 0.1 * jax.random.normal(kg, (C,), dtype=jnp.float32)
    beta = 0.1 * jax.random.normal(kb, (C,), dtype=jnp.float32)

    out = jax.block_until_ready(layer_norm_nchw(x, gamma, beta))

    # pure-JAX reference (mirrors the PyTorch rearrange + nn.LayerNorm(C) path)
    x_bsc = jnp.transpose(x, (0, 2, 3, 1)).reshape(B, H * W, C)
    mean = jnp.mean(x_bsc, axis=-1, keepdims=True)
    var = jnp.mean((x_bsc - mean) ** 2, axis=-1, keepdims=True)
    ref_bsc = (x_bsc - mean) * jax.lax.rsqrt(var + EPS) * gamma + beta
    ref = jnp.transpose(ref_bsc.reshape(B, H, W, C), (0, 3, 1, 2))

    assert out.shape == (B, C, H, W)
    assert jnp.allclose(out, ref, atol=1e-5, rtol=1e-5)
    print("KERNEL_OK")
</pallas_src>

<mosaic_0001>
module attributes {stable_mosaic.version = 11 : i64} {
  func.func @_layernorm_kernel(%arg0: i32, %arg1: i32, %arg2: i32, %arg3: memref<1x4x16x16xf32, #tpu.memory_space<vmem>>, %arg4: memref<4x1x1xf32, #tpu.memory_space<vmem>>, %arg5: memref<4x1x1xf32, #tpu.memory_space<vmem>>, %arg6: memref<1x4x16x16xf32, #tpu.memory_space<vmem>>) attributes {dimension_semantics = [#tpu.dimension_semantics<parallel>, #tpu.dimension_semantics<parallel>, #tpu.dimension_semantics<parallel>], iteration_bounds = array<i64: 2, 1, 1>, scalar_prefetch = 0 : i64, scratch_operands = 0 : i64, tpu.core_type = #tpu.core_type<tc>, window_params = [{transform_indices = @transform_0, window_bounds = array<i64: 1, 4, 16, 16>}, {pipeline_mode = #tpu.pipeline_mode<synchronous>, transform_indices = @transform_1, window_bounds = array<i64: 4, 1, 1>}, {pipeline_mode = #tpu.pipeline_mode<synchronous>, transform_indices = @transform_2, window_bounds = array<i64: 4, 1, 1>}, {transform_indices = @transform_3, window_bounds = array<i64: 1, 4, 16, 16>}]} {
    %c0 = arith.constant 0 : index
    %c0_0 = arith.constant 0 : index
    %c0_1 = arith.constant 0 : index
    %c0_2 = arith.constant 0 : index
    %0 = vector.load %arg3[%c0, %c0_0, %c0_1, %c0_2] : memref<1x4x16x16xf32, #tpu.memory_space<vmem>>, vector<1x4x16x16xf32>
    %1 = vector.shape_cast %0 : vector<1x4x16x16xf32> to vector<4x16x16xf32>
    %cst = arith.constant dense<0.000000e+00> : vector<16x16xf32>
    %2 = vector.multi_reduction <add>, %1, %cst [0] : vector<4x16x16xf32> to vector<16x16xf32>
    %3 = vector.shape_cast %2 : vector<16x16xf32> to vector<1x16x16xf32>
    %cst_3 = arith.constant 4.000000e+00 : f32
    %4 = vector.broadcast %cst_3 : f32 to vector<1x16x16xf32>
    %5 = arith.divf %3, %4 : vector<1x16x16xf32>
    %6 = vector.broadcast %5 : vector<1x16x16xf32> to vector<4x16x16xf32>
    %7 = arith.subf %1, %6 : vector<4x16x16xf32>
    %8 = arith.mulf %7, %7 : vector<4x16x16xf32>
    %cst_4 = arith.constant dense<0.000000e+00> : vector<16x16xf32>
    %9 = vector.multi_reduction <add>, %8, %cst_4 [0] : vector<4x16x16xf32> to vector<16x16xf32>
    %10 = vector.shape_cast %9 : vector<16x16xf32> to vector<1x16x16xf32>
    %cst_5 = arith.constant 4.000000e+00 : f32
    %11 = vector.broadcast %cst_5 : f32 to vector<1x16x16xf32>
    %12 = arith.divf %10, %11 : vector<1x16x16xf32>
    %cst_6 = arith.constant 9.99999974E-6 : f32
    %13 = vector.broadcast %cst_6 : f32 to vector<1x16x16xf32>
    %14 = arith.addf %12, %13 : vector<1x16x16xf32>
    %15 = math.rsqrt %14 : vector<1x16x16xf32>
    %16 = vector.broadcast %15 : vector<1x16x16xf32> to vector<4x16x16xf32>
    %17 = arith.mulf %7, %16 : vector<4x16x16xf32>
    %c0_7 = arith.constant 0 : index
    %c0_8 = arith.constant 0 : index
    %c0_9 = arith.constant 0 : index
    %18 = vector.load %arg4[%c0_7, %c0_8, %c0_9] : memref<4x1x1xf32, #tpu.memory_space<vmem>>, vector<4x1x1xf32>
    %19 = vector.broadcast %18 : vector<4x1x1xf32> to vector<4x16x16xf32>
    %20 = arith.mulf %17, %19 : vector<4x16x16xf32>
    %c0_10 = arith.constant 0 : index
    %c0_11 = arith.constant 0 : index
    %c0_12 = arith.constant 0 : index
    %21 = vector.load %arg5[%c0_10, %c0_11, %c0_12] : memref<4x1x1xf32, #tpu.memory_space<vmem>>, vector<4x1x1xf32>
    %22 = vector.broadcast %21 : vector<4x1x1xf32> to vector<4x16x16xf32>
    %23 = arith.addf %20, %22 : vector<4x16x16xf32>
    %c0_13 = arith.constant 0 : index
    %c0_14 = arith.constant 0 : index
    %c0_15 = arith.constant 0 : index
    %c0_16 = arith.constant 0 : index
    %24 = vector.load %arg6[%c0_13, %c0_14, %c0_15, %c0_16] : memref<1x4x16x16xf32, #tpu.memory_space<vmem>>, vector<1x4x16x16xf32>
    %25 = vector.shape_cast %24 : vector<1x4x16x16xf32> to vector<4x16x16xf32>
    %26 = vector.shape_cast %23 : vector<4x16x16xf32> to vector<1x4x16x16xf32>
    tpu.vector_store %arg6[%c0_13, %c0_14, %c0_15, %c0_16], %26 {strides = array<i32>} : memref<1x4x16x16xf32, #tpu.memory_space<vmem>>, vector<1x4x16x16xf32>,
    return
  }
  func.func @transform_0(%arg0: i32, %arg1: i32, %arg2: i32) -> (i32, i32, i32, i32) {
    %c0_i32 = arith.constant 0 : i32
    %c0_i32_0 = arith.constant 0 : i32
    return %arg0, %c0_i32, %arg1, %arg2 : i32, i32, i32, i32
  }
  func.func @transform_1(%arg0: i32, %arg1: i32, %arg2: i32) -> (i32, i32, i32) {
    %c0_i32 = arith.constant 0 : i32
    %c0_i32_0 = arith.constant 0 : i32
    %c0_i32_1 = arith.constant 0 : i32
    %c0_i32_2 = arith.constant 0 : i32
    return %c0_i32, %c0_i32_0, %c0_i32_1 : i32, i32, i32
  }
  func.func @transform_2(%arg0: i32, %arg1: i32, %arg2: i32) -> (i32, i32, i32) {
    %c0_i32 = arith.constant 0 : i32
    %c0_i32_0 = arith.constant 0 : i32
    %c0_i32_1 = arith.constant 0 : i32
    %c0_i32_2 = arith.constant 0 : i32
    return %c0_i32, %c0_i32_0, %c0_i32_1 : i32, i32, i32
  }
  func.func @transform_3(%arg0: i32, %arg1: i32, %arg2: i32) -> (i32, i32, i32, i32) {
    %c0_i32 = arith.constant 0 : i32
    %c0_i32_0 = arith.constant 0 : i32
    return %arg0, %c0_i32, %arg1, %arg2 : i32, i32, i32, i32
  }
}

</mosaic_0001>

<llo_original>
// kernel: tpu_custom_call.1
$region0: #{tpu_custom_call.1}
  #allocation0 [shape = 'u32[]', space=smem, size = 0x4, offset = 0x4, fixed_abs, tag = 'smem constant byte address 0x4 - core index']
  #allocation1 [shape = 'u32[72,128]{1,0:T(1,128)}', space=vmem, size = 0x9000, scoped, tag = 'internal scratch']
  %s0 = inlined_call_operand.hbm [shape: f32[2,4,16,16], index: 0, kind: input, shape index: {}]
  %s1 = inlined_call_operand.vmem [shape: f32[4,1,1], index: 1, kind: input, shape index: {}]
  %s2 = inlined_call_operand.vmem [shape: f32[4,1,1], index: 2, kind: input, shape index: {}]
  %s3 = inlined_call_operand.hbm [shape: f32[2,4,16,16], index: 3, kind: output, shape index: {}]
  %s4 = sld [smem:[#allocation0]]
  $region49: #{tpu_custom_call.1} parent=0
    _
  %s6 = ssub.s32 1, %s4
  %s7 = scalar_select 0, %s6, %s4
  $region1: #{tpu_custom_call.1} parent=0
    #allocation2 [shape = 'u8[65536]{0}', space=vmem, size = 0x10000, scoped, tag = 'input window, operand 0']
    #allocation3 [shape = 's32[2]{0}', space=sflag, size = 0x8, scoped, tag = 'scoped memory for tpu_custom_call.1']
    #allocation4 [shape = 's32[2]{0}', space=sflag, size = 0x8, scoped, tag = 'scoped memory for tpu_custom_call.1']
    #allocation5 [shape = 'u8[65536]{0}', space=vmem, size = 0x10000, scoped, tag = 'output window, operand 0']
    %8 = vsyncpa [#allocation3], 0
    %s9 = scalar_lea.sflag [#allocation3], 1
    %10 = vsyncpa %s9, 0
    %11 = vsyncpa [#allocation4], 0
    %s12 = scalar_lea.sflag [#allocation4], 1
    %13 = vsyncpa %s12, 0
    loop: start=0, step=1, limit=4
    $region2: #{tpu_custom_call.1} parent=1 // loop_pre_header
      _
    $region3: #{tpu_custom_call.1} parent=1 // loop_header
      %s15 = sphi 0, %s19
      %p16 = scmp.ge.s32.totalorder %s15, 4
      %s22 = sphi 0, %s41
      %s23 = sphi 0, %s37
      %s24 = sphi 0, %s33
      %s25 = sphi 0, %s22
      %s26 = sphi 0, %s23
      %s27 = sphi 0, %s24
      %s28 = sphi 0, %s25
      %s29 = sphi 0, %s26
      %s30 = sphi 0, %s27
      %s48 = sphi 0, %s50
      %s51 = sphi 0, %s48
      %s52 = sphi 0, %s51
      %s68 = sphi 0, %s52
      %s72 = sphi 0, %s72
      %s74 = sphi 0, %s72
      %s75 = sphi 0, %s74
      %s89 = sphi 0, %s75
      %s93 = sphi 0, %s93
      %s95 = sphi 0, %s93
      %s96 = sphi 0, %s95
      %s110 = sphi 0, %s96
      %s120 = sphi 0, %s122
      %s123 = sphi 0, %s120
      %s124 = sphi 0, %s123
      %s140 = sphi 0, %s124
    $region4: #{tpu_custom_call.1} parent=1 // loop_header_branch
      %18 = sbr.rel (%p16) target = $region8
    $region5: #{tpu_custom_call.1} parent=1 // loop_body
      %s20 = ssub.s32 %s15, 1
      %s21 = ssub.s32 %s15, 2
      %s31 = sadd.s32 1, %s24
      %p32 = scmp.ge.s32.totalorder %s31, 1
      %s33 = scalar_select %p32, 0, %s31
      %s34 = sadd.s32 1, %s23
      %s35 = scalar_select %p32, %s34, %s23
      %p36 = scmp.ge.s32.totalorder %s35, 1
      %s37 = scalar_select %p36, 0, %s35
      %s38 = sadd.s32 1, %s22
      %s39 = scalar_select %p36, %s38, %s22
      %p40 = scmp.ge.s32.totalorder %s39, 2
      %s41 = scalar_select %p40, 0, %s39
      %s42 = ssub.s32 %s22, %s41
      %s43 = ssub.s32 %s23, %s37
      %s44 = sor.u32 %s42, %s43
      %s45 = ssub.s32 %s24, %s33
      %s46 = sor.u32 %s44, %s45
      %p47 = scmp.eq.s32.totalorder %s46, 0
      %s49 = sadd.s32 %s48, 1
      %s50 = scalar_select %p47, %s48, %s49
      %p53 = pneg %p47
      %p54 = scmp.eq.s32.totalorder %s15, 1
      %p55 = por %p53, %p54
      %p56 = scmp.ne.s32.totalorder %s48, %s51
      %p57 = scmp.eq.s32.totalorder %s15, 0
      %p58 = por %p56, %p57
      %p59 = scmp.ne.s32.totalorder %s48, %s51
      %p60 = scmp.eq.s32.totalorder %s20, 1
      %p61 = por %p59, %p60
      %p62 = scmp.ne.s32.totalorder %s51, %s52
      %p63 = scmp.eq.s32.totalorder %s20, 0
      %p64 = por %p62, %p63
      %p65 = scmp.ne.s32.totalorder %s51, %s52
      %p66 = scmp.eq.s32.totalorder %s21, 1
      %p67 = por %p65, %p66
      %p69 = scmp.ne.s32.totalorder %s52, %s68
      %p70 = scmp.eq.s32.totalorder %s21, 0
      %p71 = por %p69, %p70
      %s73 = sadd.s32 %s72, 1
      %p76 = scmp.eq.s32.totalorder %s15, 1
      %p77 = scmp.ne.s32.totalorder %s72, %s74
      %p78 = scmp.eq.s32.totalorder %s15, 0
      %p79 = por %p77, %p78
      %p80 = scmp.ne.s32.totalorder %s72, %s74
      %p81 = scmp.eq.s32.totalorder %s20, 1
      %p82 = por %p80, %p81
      %p83 = scmp.ne.s32.totalorder %s74, %s75
      %p84 = scmp.eq.s32.totalorder %s20, 0
      %p85 = por %p83, %p84
      %p86 = scmp.ne.s32.totalorder %s74, %s75
      %p87 = scmp.eq.s32.totalorder %s21, 1
      %p88 = por %p86, %p87
      %p90 = scmp.ne.s32.totalorder %s75, %s89
      %p91 = scmp.eq.s32.totalorder %s21, 0
      %p92 = por %p90, %p91
      %s94 = sadd.s32 %s93, 1
      %p97 = scmp.eq.s32.totalorder %s15, 1
      %p98 = scmp.ne.s32.totalorder %s93, %s95
      %p99 = scmp.eq.s32.totalorder %s15, 0
      %p100 = por %p98, %p99
      %p101 = scmp.ne.s32.totalorder %s93, %s95
      %p102 = scmp.eq.s32.totalorder %s20, 1
      %p103 = por %p101, %p102
      %p104 = scmp.ne.s32.totalorder %s95, %s96
      %p105 = scmp.eq.s32.totalorder %s20, 0
      %p106 = por %p104, %p105
      %p107 = scmp.ne.s32.totalorder %s95, %s96
      %p108 = scmp.eq.s32.totalorder %s21, 1
      %p109 = por %p107, %p108
      %p111 = scmp.ne.s32.totalorder %s96, %s110
      %p112 = scmp.eq.s32.totalorder %s21, 0
      %p113 = por %p111, %p112
      %s114 = ssub.s32 %s22, %s41
      %s115 = ssub.s32 %s23, %s37
      %s116 = sor.u32 %s114, %s115
      %s117 = ssub.s32 %s24, %s33
      %s118 = sor.u32 %s116, %s117
      %p119 = scmp.eq.s32.totalorder %s118, 0
      %s121 = sadd.s32 %s120, 1
      %s122 = scalar_select %p119, %s120, %s121
      %p125 = pneg %p119
      %p126 = scmp.eq.s32.totalorder %s15, 1
      %p127 = por %p125, %p126
      %p128 = scmp.ne.s32.totalorder %s120, %s123
      %p129 = scmp.eq.s32.totalorder %s15, 0
      %p130 = por %p128, %p129
      %p131 = scmp.ne.s32.totalorder %s120, %s123
      %p132 = scmp.eq.s32.totalorder %s20, 1
      %p133 = por %p131, %p132
      %p134 = scmp.ne.s32.totalorder %s123, %s124
      %p135 = scmp.eq.s32.totalorder %s20, 0
      %p136 = por %p134, %p135
      %p137 = scmp.ne.s32.totalorder %s123, %s124
      %p138 = scmp.eq.s32.totalorder %s21, 1
      %p139 = por %p137, %p138
      %p141 = scmp.ne.s32.totalorder %s124, %s140
      %p142 = scmp.eq.s32.totalorder %s21, 0
      %p143 = por %p141, %p142
      %p144 = scmp.le.s32.totalorder 1, %s15
      %p145 = scmp.lt.s32.totalorder %s15, 3
      %p146 = pnand %p144, %p145
      %p147 = pneg %p146
      // Predicated region
      $region9: #{tpu_custom_call.1} parent=5 // pred_check
        _
      $region10: #{tpu_custom_call.1} parent=5 // pred_check_branch
        %149 = sbr.rel (%p146) target = $region12
      $region11: #{tpu_custom_call.1} parent=5 // pred_region
        %s150 = ssub.s32 %s15, 1
        // Predicated region
        $region13: #{tpu_custom_call.1} parent=11 // pred_check
          %p151 = pneg %p85
        $region14: #{tpu_custom_call.1} parent=11 // pred_check_branch
          %153 = sbr.rel (%p151) target = $region16
        $region15: #{tpu_custom_call.1} parent=11 // pred_region
          _
        $region16: #{tpu_custom_call.1} parent=11 // pred_fallthru
          _
        // Predicated region
        $region17: #{tpu_custom_call.1} parent=11 // pred_check
          %p154 = pneg %p106
        $region18: #{tpu_custom_call.1} parent=11 // pred_check_branch
          %156 = sbr.rel (%p154) target = $region20
        $region19: #{tpu_custom_call.1} parent=11 // pred_region
          _
        $region20: #{tpu_custom_call.1} parent=11 // pred_fallthru
          _
      $region12: #{tpu_custom_call.1} parent=5 // pred_fallthru
        _
      %p157 = scmp.lt.s32.totalorder %s15, 2
      // Predicated region
      $region21: #{tpu_custom_call.1} parent=5 // pred_check
        %p158 = pneg %p157
      $region22: #{tpu_custom_call.1} parent=5 // pred_check_branch
        %160 = sbr.rel (%p158) target = $region24
      $region23: #{tpu_custom_call.1} parent=5 // pred_region
        // Predicated region
        $region25: #{tpu_custom_call.1} parent=23 // pred_check
          %p161 = pneg %p58
        $region26: #{tpu_custom_call.1} parent=23 // pred_check_branch
          %163 = sbr.rel (%p161) target = $region28
        $region27: #{tpu_custom_call.1} parent=23 // pred_region
          %s164 = sand.u32 %s48, 1
          %s165 = scalar_lea.sflag [#allocation3], %s164
          %s166 = sand.u32 %s48, 1
          %s167 = smul.addr %s166, 64
          %s168 = scalar_lea.vmem [#allocation2], %s167
          %s169 = smul.u32 2, %s23
          %171 = vsyncadd %s165, 0
          %s172 = sadd.s32 %s24, %s169
          %s173 = smul.addr %s22, 8
          %s174 = sadd.s32 %s172, %s173
          %s175 = smul.addr %s174, 8
          %s176 = scalar_lea.hbm %s0, %s175
          %s177 = sshll.u32 %s176, 4
          %s178 = int_to_ptr.hbm [resolvable:$true] %s177
          %s179 = sshll.u32 %s168, 4
          %s180 = int_to_ptr.vmem [resolvable:$true] %s179
          %185 = dma.hbm_to_vmem [thread:$0]  %s178, 1024, %s180, %s165, 128, 128, 8
        $region28: #{tpu_custom_call.1} parent=23 // pred_fallthru
          _
      $region24: #{tpu_custom_call.1} parent=5 // pred_fallthru
        _
      %p186 = scmp.le.s32.totalorder 1, %s15
      %p187 = scmp.lt.s32.totalorder %s15, 3
      %p188 = pnand %p186, %p187
      %p189 = pneg %p188
      // Predicated region
      $region29: #{tpu_custom_call.1} parent=5 // pred_check
        _
      $region30: #{tpu_custom_call.1} parent=5 // pred_check_branch
        %191 = sbr.rel (%p188) target = $region32
      $region31: #{tpu_custom_call.1} parent=5 // pred_region
        %s192 = ssub.s32 %s15, 1
        %s193 = sand.u32 %s51, 1
        %s194 = scalar_lea.sflag [#allocation3], %s193
        %s195 = sand.u32 %s51, 1
        %s196 = smul.addr %s195, 64
        %s197 = scalar_lea.vmem [#allocation2], %s196
        // Predicated region
        $region33: #{tpu_custom_call.1} parent=31 // pred_check
          %p198 = pneg %p64
        $region34: #{tpu_custom_call.1} parent=31 // pred_check_branch
          %200 = sbr.rel (%p198) target = $region36
        $region35: #{tpu_custom_call.1} parent=31 // pred_region
          %202 = dma.done %s194, 1024
        $region36: #{tpu_custom_call.1} parent=31 // pred_fallthru
          _
        %s203 = sand.u32 %s51, 1
        %s204 = scalar_lea.sflag [#allocation3], %s203
        %s205 = sand.u32 %s51, 1
        %s206 = smul.addr %s205, 64
        %s207 = scalar_lea.vmem [#allocation2], %s206
        %p208 = pneg %p64
        %p209 = pneg %p61
        %p210 = pneg %p85
        %p211 = pneg %p82
        %p212 = pneg %p106
        %p213 = pneg %p103
        %p214 = pneg %p136
        %p215 = pneg %p133
        %s216 = sand.u32 %s123, 1
        %s217 = scalar_lea.sflag [#allocation4], %s216
        %s218 = sand.u32 %s123, 1
        %s219 = smul.addr %s218, 64
        %s220 = scalar_lea.vmem [#allocation5], %s219
        %s221 = smul.u32 2, %s26
        %s222 = smul.u32 2, %s26
        %v223 = vld [vmem:[%s197] sm:$0xff]
        %v224 = vld [vmem:[%s197 + $0x8] sm:$0xff]
        %v225 = vld [vmem:[%s197 + $0x10] sm:$0xff]
        %v226 = vld [vmem:[%s197 + $0x18] sm:$0xff]
        %v227 = vld [vmem:[%s197 + $0x20] sm:$0xff]
        %v228 = vld [vmem:[%s197 + $0x28] sm:$0xff]
        %v229 = vld [vmem:[%s197 + $0x30] sm:$0xff]
        %v230 = vld [vmem:[%s197 + $0x38] sm:$0xff]
        %vm231 = vcmask 130048
        %v232 = vsel %vm231, %v223, 0.0
        %v233 = vsel %vm231, %v225, 0.0
        %v234 = vadd.f32 %v232, %v233
        %v235 = vsel %vm231, %v227, 0.0
        %v236 = vadd.f32 %v234, %v235
        %v237 = vsel %vm231, %v229, 0.0
        %v238 = vadd.f32 %v236, %v237
        %v239 = vsel %vm231, %v224, 0.0
        %v240 = vsel %vm231, %v226, 0.0
        %v241 = vadd.f32 %v239, %v240
        %v242 = vsel %vm231, %v228, 0.0
        %v243 = vadd.f32 %v241, %v242
        %v244 = vsel %vm231, %v230, 0.0
        %v245 = vadd.f32 %v243, %v244
        %v246 = vrcp.pop 4.0
        %v247 = vmul.f32 4.0, %v246
        %v248 = vsub.f32 1.0, %v247
        %v249 = vmul.f32 %v246, %v248
        %v250 = vadd.f32 %v246, %v249
        %vm251 = vweird.f32 %v246
        %v252 = vsel %vm251, %v246, %v250
        %v253 = vmul.f32 %v238, %v252
        %v254 = vmul.f32 %v245, %v252
        %v255 = vsub.f32 %v223, %v253
        %v256 = vsub.f32 %v224, %v254
        %v257 = vsub.f32 %v225, %v253
        %v258 = vsub.f32 %v226, %v254
        %v259 = vsub.f32 %v227, %v253
        %v260 = vsub.f32 %v228, %v254
        %v261 = vsub.f32 %v229, %v253
        %v262 = vsub.f32 %v230, %v254
        %v263 = vmul.f32 %v255, %v255
        %v264 = vmul.f32 %v256, %v256
        %v265 = vmul.f32 %v257, %v257
        %v266 = vmul.f32 %v258, %v258
        %v267 = vmul.f32 %v259, %v259
        %v268 = vmul.f32 %v260, %v260
        %v269 = vmul.f32 %v261, %v261
        %v270 = vmul.f32 %v262, %v262
        %v271 = vsel %vm231, %v263, 0.0
        %v272 = vsel %vm231, %v265, 0.0
        %v273 = vadd.f32 %v271, %v272
        %v274 = vsel %vm231, %v267, 0.0
        %v275 = vadd.f32 %v273, %v274
        %v276 = vsel %vm231, %v269, 0.0
        %v277 = vadd.f32 %v275, %v276
        %v278 = vsel %vm231, %v264, 0.0
        %v279 = vsel %vm231, %v266, 0.0
        %v280 = vadd.f32 %v278, %v279
        %v281 = vsel %vm231, %v268, 0.0
        %v282 = vadd.f32 %v280, %v281
        %v283 = vsel %vm231, %v270, 0.0
        %v284 = vadd.f32 %v282, %v283
        %v285 = vmul.f32 %v277, %v252
        %v286 = vmul.f32 %v284, %v252
        %v287 = vadd.f32 %v285, 1e-05
        %v288 = vadd.f32 %v286, 1e-05
        %v289 = vrsqrt.pop %v287
        %v290 = vmul.f32 %v289, %v287
        %v291 = vmul.f32 %v290, %v289
        %v292 = vmul.f32 0.5, %v291
        %v293 = vsub.f32 1.5, %v292
        %v294 = vmul.f32 %v289, %v293
        %vm295 = vweird.f32 %v287
        %vm296 = vweird.f32 %v289
        %vm297 = vmor %vm295, %vm296
        %v298 = vsel %vm297, %v289, %v294
        %v299 = vrsqrt.pop %v288
        %v300 = vmul.f32 %v299, %v288
        %v301 = vmul.f32 %v300, %v299
        %v302 = vmul.f32 0.5, %v301
        %v303 = vsub.f32 1.5, %v302
        %v304 = vmul.f32 %v299, %v303
        %vm305 = vweird.f32 %v288
        %vm306 = vweird.f32 %v299
        %vm307 = vmor %vm305, %vm306
        %v308 = vsel %vm307, %v299, %v304
        %v309 = vmul.f32 %v255, %v298
        %v310 = vmul.f32 %v256, %v308
        %v311 = vmul.f32 %v257, %v298
        %v312 = vmul.f32 %v258, %v308
        %v313 = vmul.f32 %v259, %v298
        %v314 = vmul.f32 %v260, %v308
        %v315 = vmul.f32 %v261, %v298
        %v316 = vmul.f32 %v262, %v308
        %v317 = vld [vmem:[%s1] sm:$0x1]
        %v318 = vld [vmem:[%s1 + $0x1] sm:$0x1]
        %v319 = vld [vmem:[%s1 + $0x2] sm:$0x1]
        %v320 = vld [vmem:[%s1 + $0x3] sm:$0x1]
        %v325 = vperm.slane %v317, 0
        %v326 = vperm.slane %v318, 0
        %v327 = vperm.slane %v319, 0
        %v328 = vperm.slane %v320, 0
        %329 = vset.pattern.permute.xlu0 0
        %330 = vperm.xlu0 %329, %v325
        %v331 = vpop.permute.xlu0 %330
        %333 = vset.pattern.permute.xlu0 0
        %334 = vperm.xlu0 %333, %v326
        %v335 = vpop.permute.xlu0 %334
        %337 = vset.pattern.permute.xlu0 0
        %338 = vperm.xlu0 %337, %v327
        %v339 = vpop.permute.xlu0 %338
        %341 = vset.pattern.permute.xlu0 0
        %342 = vperm.xlu0 %341, %v328
        %v343 = vpop.permute.xlu0 %342
        %v345 = vmul.f32 %v309, %v331
        %v346 = vmul.f32 %v310, %v331
        %v347 = vmul.f32 %v311, %v335
        %v348 = vmul.f32 %v312, %v335
        %v349 = vmul.f32 %v313, %v339
        %v350 = vmul.f32 %v314, %v339
        %v351 = vmul.f32 %v315, %v343
        %v352 = vmul.f32 %v316, %v343
        %v353 = vld [vmem:[%s2] sm:$0x1]
        %v354 = vld [vmem:[%s2 + $0x1] sm:$0x1]
        %v355 = vld [vmem:[%s2 + $0x2] sm:$0x1]
        %v356 = vld [vmem:[%s2 + $0x3] sm:$0x1]
        %v361 = vperm.slane %v353, 0
        %v362 = vperm.slane %v354, 0
        %v363 = vperm.slane %v355, 0
        %v364 = vperm.slane %v356, 0
        %365 = vset.pattern.permute.xlu0 0
        %366 = vperm.xlu0 %365, %v361
        %v367 = vpop.permute.xlu0 %366
        %369 = vset.pattern.permute.xlu0 0
        %370 = vperm.xlu0 %369, %v362
        %v371 = vpop.permute.xlu0 %370
        %373 = vset.pattern.permute.xlu0 0
        %374 = vperm.xlu0 %373, %v363
        %v375 = vpop.permute.xlu0 %374
        %377 = vset.pattern.permute.xlu0 0
        %378 = vperm.xlu0 %377, %v364
        %v379 = vpop.permute.xlu0 %378
        %v381 = vadd.f32 %v345, %v367
        %v382 = vadd.f32 %v346, %v367
        %v383 = vadd.f32 %v347, %v371
        %v384 = vadd.f32 %v348, %v371
        %v385 = vadd.f32 %v349, %v375
        %v386 = vadd.f32 %v350, %v375
        %v387 = vadd.f32 %v351, %v379
        %v388 = vadd.f32 %v352, %v379
        %389 = vst.msk [vmem:[%s220] sm:$0xff] %vm231, %v381
        %390 = vst.msk [vmem:[%s220 + $0x8] sm:$0xff] %vm231, %v382
        %391 = vst.msk [vmem:[%s220 + $0x10] sm:$0xff] %vm231, %v383
        %392 = vst.msk [vmem:[%s220 + $0x18] sm:$0xff] %vm231, %v384
        %393 = vst.msk [vmem:[%s220 + $0x20] sm:$0xff] %vm231, %v385
        %394 = vst.msk [vmem:[%s220 + $0x28] sm:$0xff] %vm231, %v386
        %395 = vst.msk [vmem:[%s220 + $0x30] sm:$0xff] %vm231, %v387
        %396 = vst.msk [vmem:[%s220 + $0x38] sm:$0xff] %vm231, %v388
        %s397 = sand.u32 %s123, 1
        %s398 = scalar_lea.sflag [#allocation4], %s397
        %s399 = sand.u32 %s123, 1
        %s400 = smul.addr %s399, 64
        %s401 = scalar_lea.vmem [#allocation5], %s400
        // Predicated region
        $region37: #{tpu_custom_call.1} parent=31 // pred_check
          %p402 = pneg %p133
        $region38: #{tpu_custom_call.1} parent=31 // pred_check_branch
          %404 = sbr.rel (%p402) target = $region40
        $region39: #{tpu_custom_call.1} parent=31 // pred_region
          %s405 = smul.u32 2, %s26
          %407 = vsyncadd %s398, 0
          %s408 = sadd.s32 %s27, %s405
          %s409 = smul.addr %s25, 8
          %s410 = sadd.s32 %s408, %s409
          %s411 = smul.addr %s410, 8
          %s412 = scalar_lea.hbm %s3, %s411
          %s413 = sshll.u32 %s401, 4
          %s414 = int_to_ptr.vmem [resolvable:$true] %s413
          %s415 = sshll.u32 %s412, 4
          %s416 = int_to_ptr.hbm [resolvable:$true] %s415
          %421 = dma.vmem_to_hbm [thread:$0]  %s414, 1024, %s416, %s398, 128, 128, 8
        $region40: #{tpu_custom_call.1} parent=31 // pred_fallthru
          _
      $region32: #{tpu_custom_call.1} parent=5 // pred_fallthru
        _
      %p422 = scmp.le.s32.totalorder 2, %s15
      // Predicated region
      $region41: #{tpu_custom_call.1} parent=5 // pred_check
        %p423 = pneg %p422
      $region42: #{tpu_custom_call.1} parent=5 // pred_check_branch
        %425 = sbr.rel (%p423) target = $region44
      $region43: #{tpu_custom_call.1} parent=5 // pred_region
        %s426 = ssub.s32 %s15, 2
        // Predicated region
        $region45: #{tpu_custom_call.1} parent=43 // pred_check
          %p427 = pneg %p139
        $region46: #{tpu_custom_call.1} parent=43 // pred_check_branch
          %429 = sbr.rel (%p427) target = $region48
        $region47: #{tpu_custom_call.1} parent=43 // pred_region
          %s430 = sand.u32 %s124, 1
          %s431 = scalar_lea.sflag [#allocation4], %s430
          %s432 = sand.u32 %s124, 1
          %s433 = smul.addr %s432, 64
          %s434 = scalar_lea.vmem [#allocation5], %s433
          %436 = dma.done %s431, 1024
        $region48: #{tpu_custom_call.1} parent=43 // pred_fallthru
          _
      $region44: #{tpu_custom_call.1} parent=5 // pred_fallthru
        _
    $region6: #{tpu_custom_call.1} parent=1 // loop_footer
      %s19 = sadd.s32 1, %s15
    $region7: #{tpu_custom_call.1} parent=1 // loop_footer_branch
      %14 = sbr.rel target = $region3
    $region8: #{tpu_custom_call.1} parent=1 // loop_exit
      _
    %437 = vsyncpa [#allocation3], 1
    %s438 = scalar_lea.sflag [#allocation3], 1
    %439 = vsyncpa %s438, 1
    %440 = vsyncpa [#allocation4], 1
    %s441 = scalar_lea.sflag [#allocation4], 1
    %442 = vsyncpa %s441, 1

</llo_original>
